<compile_context>
chip_gen: v6e
topology: v6e:2x2x1
jax: 0.10.0
libtpu: 0.0.40
codegen_flags: <defaults>
</compile_context>

<pallas_src>
import functools

import jax
import jax.numpy as jnp
from jax.experimental import pallas as pl
from jax.experimental.pallas import tpu as pltpu


def _critic_kernel(state_ref, action_ref,
                   w1s_ref, w1a_ref, b1_ref,     # fused layer 1 (both heads)
                   w12_ref, b12_ref,             # head-1 layer 2
                   w22_ref, b22_ref,             # head-2 layer 2
                   wout_ref, bout_ref,           # stacked output rows (2, H), (1, 2)
                   q_ref, *, compute_dtype):
    H = w12_ref.shape[0]

    s = state_ref[...].astype(compute_dtype)
    a = action_ref[...].astype(compute_dtype)

    # ---- fused first layer for both heads: (bm, 2H), f32 accumulate ----
    h = (jnp.dot(s, w1s_ref[...], preferred_element_type=jnp.float32)
         + jnp.dot(a, w1a_ref[...], preferred_element_type=jnp.float32)
         + b1_ref[...])
    h = jnp.maximum(h, 0.0)
    h1 = h[:, :H]
    h2 = h[:, H:]

    # ---- second layer, per head (f32 epilogue) ----
    h1 = jnp.maximum(
        jnp.dot(h1.astype(compute_dtype), w12_ref[...],
                preferred_element_type=jnp.float32) + b12_ref[...], 0.0)
    h2 = jnp.maximum(
        jnp.dot(h2.astype(compute_dtype), w22_ref[...],
                preferred_element_type=jnp.float32) + b22_ref[...], 0.0)

    # ---- output projection (out_features == 1): VPU mul + lane reduce ----
    # wout_ref[r] is the r-th head's (1, H) output row; avoids two 1-column
    # MXU matmuls and their result-FIFO drains.
    q1 = jnp.sum(h1 * wout_ref[0:1, :], axis=-1, keepdims=True)   # (bm, 1)
    q2 = jnp.sum(h2 * wout_ref[1:2, :], axis=-1, keepdims=True)   # (bm, 1)

    # Pack both heads into one (bm, 2) store (select instead of lane concat).
    col = jax.lax.broadcasted_iota(jnp.int32, q_ref.shape, 1)
    q = jnp.where(col == 0, q1, q2) + bout_ref[...]
    q_ref[...] = q.astype(q_ref.dtype)


def critic_forward(state, action, params, *, batch_tile=512,
                   compute_dtype=jnp.float32):
    """Pallas-backed forward pass mirroring Critic.forward(state, action)."""
    B, sd = state.shape
    ad = action.shape[1]
    H = params["w1_2"].shape[0]

    # ---- parameter prep (tiny, hoisted/fused under jit) ----
    # Split first-layer weights into state/action parts and fuse the two heads
    # along out_features -> (sd, 2H), (ad, 2H), (1, 2H).
    w1s = jnp.concatenate([params["w1_1"][:sd], params["w2_1"][:sd]], axis=1)
    w1a = jnp.concatenate([params["w1_1"][sd:], params["w2_1"][sd:]], axis=1)
    b1 = jnp.concatenate([params["b1_1"], params["b2_1"]], axis=1)
    w12, b12 = params["w1_2"], params["b1_2"]
    w22, b22 = params["w2_2"], params["b2_2"]
    # Output rows stacked as (2, H) + bias (1, 2); stay f32 for the VPU path.
    wout = jnp.concatenate([params["w1_out"].T, params["w2_out"].T], axis=0)
    bout = jnp.concatenate([params["b1_out"], params["b2_out"]], axis=1)

    # Narrow matmul operands only; epilogue (bias/ReLU/reduce) stays f32,
    # which is safe on v5e (no bf16 VPU) as well as v6e/v7x.
    w1s = w1s.astype(compute_dtype)
    w1a = w1a.astype(compute_dtype)
    w12 = w12.astype(compute_dtype)
    w22 = w22.astype(compute_dtype)

    # ---- batch tiling: big tiles, >= 2 grid steps when possible, pad batch ----
    bm = min(batch_tile, B)
    if B > 16 and bm >= B:
        bm = -(-B // 2)            # keep 2 grid steps so both v7x TCs get work
    bm = max(8, -(-bm // 8) * 8)   # sublane multiple
    B_pad = -(-B // bm) * bm
    if B_pad != B:
        pad = B_pad - B
        state = jnp.pad(state, ((0, pad), (0, 0)))
        action = jnp.pad(action, ((0, pad), (0, 0)))
    grid = (B_pad // bm,)

    # ---- VMEM budget: double-buffered tiles + resident weights + headroom ----
    w_itemsize = jnp.dtype(compute_dtype).itemsize
    param_bytes = ((sd + ad) * 2 * H + 2 * H * H) * w_itemsize \
        + (2 * H + H + H + 2 * H + 2) * 4
    tile_bytes = bm * (sd + ad + 2) * 4
    act_bytes = bm * 2 * H * 4            # (bm, 2H) intermediate headroom
    vmem_limit = int(2 * (param_bytes + tile_bytes) + 2 * act_bytes + (8 << 20))
    vmem_limit = min(vmem_limit, 64 << 20)   # stay inside v7x's 64 MiB VMEM

    def batch_spec(cols):
        return pl.BlockSpec((bm, cols), lambda i: (i, 0))

    def full_spec(arr):
        # Resident across all grid steps (index map constant).
        # TODO(synk): mark single-buffered (pl.Buffered(1)) if hidden_dim grows large.
        return pl.BlockSpec(arr.shape, lambda i: (0, 0))

    weights = [w1s, w1a, b1, w12, b12, w22, b22, wout, bout]

    q = pl.pallas_call(
        functools.partial(_critic_kernel, compute_dtype=compute_dtype),
        out_shape=jax.ShapeDtypeStruct((B_pad, 2), jnp.float32),
        grid_spec=pltpu.PrefetchScalarGridSpec(
            num_scalar_prefetch=0,
            grid=grid,
            in_specs=[batch_spec(sd), batch_spec(ad)]
                     + [full_spec(w) for w in weights],
            out_specs=pl.BlockSpec((bm, 2), lambda i: (i, 0)),
        ),
        compiler_params=pltpu.CompilerParams(
            dimension_semantics=("parallel",),
            vmem_limit_bytes=vmem_limit),
    )(state, action, *weights)

    return q[:B, 0:1], q[:B, 1:2]


def init_critic_params(key, state_dim, action_dim, hidden_dim=256):
    """nn.Linear default init: U(-1/sqrt(fan_in), 1/sqrt(fan_in)).

    Weights stored as (in_features, out_features)."""
    dims = [
        ("w1_1", (state_dim + action_dim, hidden_dim)),
        ("b1_1", (1, hidden_dim)),
        ("w1_2", (hidden_dim, hidden_dim)),
        ("b1_2", (1, hidden_dim)),
        ("w1_out", (hidden_dim, 1)),
        ("b1_out", (1, 1)),
        ("w2_1", (state_dim + action_dim, hidden_dim)),
        ("b2_1", (1, hidden_dim)),
        ("w2_2", (hidden_dim, hidden_dim)),
        ("b2_2", (1, hidden_dim)),
        ("w2_out", (hidden_dim, 1)),
        ("b2_out", (1, 1)),
    ]
    fan_ins = {
        "b1_1": state_dim + action_dim, "b2_1": state_dim + action_dim,
        "b1_2": hidden_dim, "b2_2": hidden_dim,
        "b1_out": hidden_dim, "b2_out": hidden_dim,
    }
    params = {}
    keys = jax.random.split(key, len(dims))
    for (name, shape), k in zip(dims, keys):
        fan_in = shape[0] if name.startswith("w") else fan_ins[name]
        bound = 1.0 / (fan_in ** 0.5)
        params[name] = jax.random.uniform(k, shape, jnp.float32, -bound, bound)
    return params


def critic_reference(state, action, params):
    """Pure-JAX reference for correctness checking."""
    xu = jnp.concatenate([state, action], axis=1)
    h1 = jax.nn.relu(xu @ params["w1_1"] + params["b1_1"])
    h1 = jax.nn.relu(h1 @ params["w1_2"] + params["b1_2"])
    q1 = h1 @ params["w1_out"] + params["b1_out"]
    h2 = jax.nn.relu(xu @ params["w2_1"] + params["b2_1"])
    h2 = jax.nn.relu(h2 @ params["w2_2"] + params["b2_2"])
    q2 = h2 @ params["w2_out"] + params["b2_out"]
    return q1, q2


if __name__ == "__main__":
    key = jax.random.PRNGKey(0)
    k_param, k_state, k_action = jax.random.split(key, 3)

    batch, state_dim, action_dim, hidden_dim = 8, 8, 4, 32

    params = init_critic_params(k_param, state_dim, action_dim, hidden_dim)
    state = jax.random.normal(k_state, (batch, state_dim), jnp.float32)
    action = jax.random.normal(k_action, (batch, action_dim), jnp.float32)

    q1_ref, q2_ref = critic_reference(state, action, params)

    # f32 path.
    q1, q2 = critic_forward(state, action, params)
    q1, q2 = jax.block_until_ready((q1, q2))
    assert q1.shape == (batch, 1) and q2.shape == (batch, 1)
    assert jnp.allclose(q1, q1_ref, atol=1e-3, rtol=1e-3)
    assert jnp.allclose(q2, q2_ref, atol=1e-3, rtol=1e-3)

    # bf16 matmul operands, f32 accumulate/epilogue (v5e/v6e/v7x narrow path).
    q1b, q2b = critic_forward(state, action, params, compute_dtype=jnp.bfloat16)
    q1b, q2b = jax.block_until_ready((q1b, q2b))
    assert jnp.allclose(q1b, q1_ref, atol=5e-2, rtol=5e-2)
    assert jnp.allclose(q2b, q2_ref, atol=5e-2, rtol=5e-2)

    # Padded, multi-grid-step path (batch not a multiple of the tile).
    B2 = 20
    k_s2, k_a2 = jax.random.split(jax.random.PRNGKey(1), 2)
    state2 = jax.random.normal(k_s2, (B2, state_dim), jnp.float32)
    action2 = jax.random.normal(k_a2, (B2, action_dim), jnp.float32)
    q1c, q2c = critic_forward(state2, action2, params)
    q1c, q2c = jax.block_until_ready((q1c, q2c))
    q1c_ref, q2c_ref = critic_reference(state2, action2, params)
    assert q1c.shape == (B2, 1) and q2c.shape == (B2, 1)
    assert jnp.allclose(q1c, q1c_ref, atol=1e-3, rtol=1e-3)
    assert jnp.allclose(q2c, q2c_ref, atol=1e-3, rtol=1e-3)

    print("KERNEL_OK")
</pallas_src>

<mosaic_0001>
module attributes {stable_mosaic.version = 11 : i64} {
  func.func @_critic_kernel(%arg0: i32, %arg1: memref<8x8xf32, #tpu.memory_space<vmem>>, %arg2: memref<8x4xf32, #tpu.memory_space<vmem>>, %arg3: memref<8x64xf32, #tpu.memory_space<vmem>>, %arg4: memref<4x64xf32, #tpu.memory_space<vmem>>, %arg5: memref<1x64xf32, #tpu.memory_space<vmem>>, %arg6: memref<32x32xf32, #tpu.memory_space<vmem>>, %arg7: memref<1x32xf32, #tpu.memory_space<vmem>>, %arg8: memref<32x32xf32, #tpu.memory_space<vmem>>, %arg9: memref<1x32xf32, #tpu.memory_space<vmem>>, %arg10: memref<2x32xf32, #tpu.memory_space<vmem>>, %arg11: memref<1x2xf32, #tpu.memory_space<vmem>>, %arg12: memref<8x2xf32, #tpu.memory_space<vmem>>) attributes {dimension_semantics = [#tpu.dimension_semantics<parallel>], iteration_bounds = array<i64: 1>, scalar_prefetch = 0 : i64, scratch_operands = 0 : i64, tpu.core_type = #tpu.core_type<tc>, window_params = [{transform_indices = @transform_0, window_bounds = array<i64: 8, 8>}, {transform_indices = @transform_1, window_bounds = array<i64: 8, 4>}, {pipeline_mode = #tpu.pipeline_mode<synchronous>, transform_indices = @transform_2, window_bounds = array<i64: 8, 64>}, {pipeline_mode = #tpu.pipeline_mode<synchronous>, transform_indices = @transform_3, window_bounds = array<i64: 4, 64>}, {pipeline_mode = #tpu.pipeline_mode<synchronous>, transform_indices = @transform_4, window_bounds = array<i64: 1, 64>}, {pipeline_mode = #tpu.pipeline_mode<synchronous>, transform_indices = @transform_5, window_bounds = array<i64: 32, 32>}, {pipeline_mode = #tpu.pipeline_mode<synchronous>, transform_indices = @transform_6, window_bounds = array<i64: 1, 32>}, {pipeline_mode = #tpu.pipeline_mode<synchronous>, transform_indices = @transform_7, window_bounds = array<i64: 32, 32>}, {pipeline_mode = #tpu.pipeline_mode<synchronous>, transform_indices = @transform_8, window_bounds = array<i64: 1, 32>}, {pipeline_mode = #tpu.pipeline_mode<synchronous>, transform_indices = @transform_9, window_bounds = array<i64: 2, 32>}, {pipeline_mode = #tpu.pipeline_mode<synchronous>, transform_indices = @transform_10, window_bounds = array<i64: 1, 2>}, {transform_indices = @transform_11, window_bounds = array<i64: 8, 2>}]} {
    %c0 = arith.constant 0 : index
    %c0_0 = arith.constant 0 : index
    %0 = vector.load %arg1[%c0, %c0_0] : memref<8x8xf32, #tpu.memory_space<vmem>>, vector<8x8xf32>
    %c0_1 = arith.constant 0 : index
    %c0_2 = arith.constant 0 : index
    %1 = vector.load %arg2[%c0_1, %c0_2] : memref<8x4xf32, #tpu.memory_space<vmem>>, vector<8x4xf32>
    %c0_3 = arith.constant 0 : index
    %c0_4 = arith.constant 0 : index
    %2 = vector.load %arg3[%c0_3, %c0_4] : memref<8x64xf32, #tpu.memory_space<vmem>>, vector<8x64xf32>
    %cst = arith.constant dense<0.000000e+00> : vector<8x64xf32>
    %3 = tpu.matmul %0, %2, %cst {dimension_numbers = #tpu.dot_dimension_numbers<[1], [0], [0], [1], [0, 0, 1, 1], [], []>} : vector<8x8xf32>, vector<8x64xf32>, vector<8x64xf32> -> vector<8x64xf32>
    %c0_5 = arith.constant 0 : index
    %c0_6 = arith.constant 0 : index
    %4 = vector.load %arg4[%c0_5, %c0_6] : memref<4x64xf32, #tpu.memory_space<vmem>>, vector<4x64xf32>
    %cst_7 = arith.constant dense<0.000000e+00> : vector<8x64xf32>
    %5 = tpu.matmul %1, %4, %cst_7 {dimension_numbers = #tpu.dot_dimension_numbers<[1], [0], [0], [1], [0, 0, 1, 1], [], []>} : vector<8x4xf32>, vector<4x64xf32>, vector<8x64xf32> -> vector<8x64xf32>
    %6 = arith.addf %3, %5 : vector<8x64xf32>
    %c0_8 = arith.constant 0 : index
    %c0_9 = arith.constant 0 : index
    %7 = vector.load %arg5[%c0_8, %c0_9] : memref<1x64xf32, #tpu.memory_space<vmem>>, vector<1x64xf32>
    %8 = vector.broadcast %7 : vector<1x64xf32> to vector<8x64xf32>
    %9 = arith.addf %6, %8 : vector<8x64xf32>
    %cst_10 = arith.constant 0.000000e+00 : f32
    %10 = vector.broadcast %cst_10 : f32 to vector<8x64xf32>
    %11 = arith.maximumf %9, %10 : vector<8x64xf32>
    %12 = vector.extract_strided_slice %11 {offsets = [0, 0], sizes = [8, 32], strides = [1, 1]} : vector<8x64xf32> to vector<8x32xf32>
    %13 = vector.extract_strided_slice %11 {offsets = [0, 32], sizes = [8, 32], strides = [1, 1]} : vector<8x64xf32> to vector<8x32xf32>
    %c0_11 = arith.constant 0 : index
    %c0_12 = arith.constant 0 : index
    %14 = vector.load %arg6[%c0_11, %c0_12] : memref<32x32xf32, #tpu.memory_space<vmem>>, vector<32x32xf32>
    %cst_13 = arith.constant dense<0.000000e+00> : vector<8x32xf32>
    %15 = tpu.matmul %12, %14, %cst_13 {dimension_numbers = #tpu.dot_dimension_numbers<[1], [0], [0], [1], [0, 0, 1, 1], [], []>} : vector<8x32xf32>, vector<32x32xf32>, vector<8x32xf32> -> vector<8x32xf32>
    %c0_14 = arith.constant 0 : index
    %c0_15 = arith.constant 0 : index
    %16 = vector.load %arg7[%c0_14, %c0_15] : memref<1x32xf32, #tpu.memory_space<vmem>>, vector<1x32xf32>
    %17 = vector.broadcast %16 : vector<1x32xf32> to vector<8x32xf32>
    %18 = arith.addf %15, %17 : vector<8x32xf32>
    %cst_16 = arith.constant 0.000000e+00 : f32
    %19 = vector.broadcast %cst_16 : f32 to vector<8x32xf32>
    %20 = arith.maximumf %18, %19 : vector<8x32xf32>
    %c0_17 = arith.constant 0 : index
    %c0_18 = arith.constant 0 : index
    %21 = vector.load %arg8[%c0_17, %c0_18] : memref<32x32xf32, #tpu.memory_space<vmem>>, vector<32x32xf32>
    %cst_19 = arith.constant dense<0.000000e+00> : vector<8x32xf32>
    %22 = tpu.matmul %13, %21, %cst_19 {dimension_numbers = #tpu.dot_dimension_numbers<[1], [0], [0], [1], [0, 0, 1, 1], [], []>} : vector<8x32xf32>, vector<32x32xf32>, vector<8x32xf32> -> vector<8x32xf32>
    %c0_20 = arith.constant 0 : index
    %c0_21 = arith.constant 0 : index
    %23 = vector.load %arg9[%c0_20, %c0_21] : memref<1x32xf32, #tpu.memory_space<vmem>>, vector<1x32xf32>
    %24 = vector.broadcast %23 : vector<1x32xf32> to vector<8x32xf32>
    %25 = arith.addf %22, %24 : vector<8x32xf32>
    %cst_22 = arith.constant 0.000000e+00 : f32
    %26 = vector.broadcast %cst_22 : f32 to vector<8x32xf32>
    %27 = arith.maximumf %25, %26 : vector<8x32xf32>
    %c0_23 = arith.constant 0 : index
    %c0_24 = arith.constant 0 : index
    %28 = vector.load %arg10[%c0_23, %c0_24] : memref<2x32xf32, #tpu.memory_space<vmem>>, vector<1x32xf32>
    %29 = vector.broadcast %28 : vector<1x32xf32> to vector<8x32xf32>
    %30 = arith.mulf %20, %29 : vector<8x32xf32>
    %cst_25 = arith.constant dense<0.000000e+00> : vector<8xf32>
    %31 = vector.multi_reduction <add>, %30, %cst_25 [1] : vector<8x32xf32> to vector<8xf32>
    %32 = vector.shape_cast %31 : vector<8xf32> to vector<8x1xf32>
    %c1 = arith.constant 1 : index
    %c0_26 = arith.constant 0 : index
    %33 = vector.load %arg10[%c1, %c0_26] : memref<2x32xf32, #tpu.memory_space<vmem>>, vector<1x32xf32>
    %34 = vector.broadcast %33 : vector<1x32xf32> to vector<8x32xf32>
    %35 = arith.mulf %27, %34 : vector<8x32xf32>
    %cst_27 = arith.constant dense<0.000000e+00> : vector<8xf32>
    %36 = vector.multi_reduction <add>, %35, %cst_27 [1] : vector<8x32xf32> to vector<8xf32>
    %37 = vector.shape_cast %36 : vector<8xf32> to vector<8x1xf32>
    %38 = tpu.iota {dimensions = array<i32: 1>} : vector<8x2xi32>
    %c0_i32 = arith.constant 0 : i32
    %39 = vector.broadcast %c0_i32 : i32 to vector<8x2xi32>
    %40 = arith.cmpi eq, %38, %39 : vector<8x2xi32>
    %41 = vector.shape_cast %32 : vector<8x1xf32> to vector<8x1xf32>
    %42 = vector.broadcast %41 : vector<8x1xf32> to vector<8x2xf32>
    %43 = vector.shape_cast %37 : vector<8x1xf32> to vector<8x1xf32>
    %44 = vector.broadcast %43 : vector<8x1xf32> to vector<8x2xf32>
    %45 = arith.select %40, %42, %44 : vector<8x2xi1>, vector<8x2xf32>
    %c0_28 = arith.constant 0 : index
    %c0_29 = arith.constant 0 : index
    %46 = vector.load %arg11[%c0_28, %c0_29] : memref<1x2xf32, #tpu.memory_space<vmem>>, vector<1x2xf32>
    %47 = vector.broadcast %46 : vector<1x2xf32> to vector<8x2xf32>
    %48 = arith.addf %45, %47 : vector<8x2xf32>
    %c0_30 = arith.constant 0 : index
    %c0_31 = arith.constant 0 : index
    %49 = vector.load %arg12[%c0_30, %c0_31] : memref<8x2xf32, #tpu.memory_space<vmem>>, vector<8x2xf32>
    tpu.vector_store %arg12[%c0_30, %c0_31], %48 {strides = array<i32>} : memref<8x2xf32, #tpu.memory_space<vmem>>, vector<8x2xf32>,
    return
  }
  func.func @transform_0(%arg0: i32) -> (i32, i32) {
    %c0_i32 = arith.constant 0 : i32
    %c0_i32_0 = arith.constant 0 : i32
    return %arg0, %c0_i32 : i32, i32
  }
  func.func @transform_1(%arg0: i32) -> (i32, i32) {
    %c0_i32 = arith.constant 0 : i32
    %c0_i32_0 = arith.constant 0 : i32
    return %arg0, %c0_i32 : i32, i32
  }
  func.func @transform_2(%arg0: i32) -> (i32, i32) {
    %c0_i32 = arith.constant 0 : i32
    %c0_i32_0 = arith.constant 0 : i32
    %c0_i32_1 = arith.constant 0 : i32
    return %c0_i32, %c0_i32_0 : i32, i32
  }
  func.func @transform_3(%arg0: i32) -> (i32, i32) {
    %c0_i32 = arith.constant 0 : i32
    %c0_i32_0 = arith.constant 0 : i32
    %c0_i32_1 = arith.constant 0 : i32
    return %c0_i32, %c0_i32_0 : i32, i32
  }
  func.func @transform_4(%arg0: i32) -> (i32, i32) {
    %c0_i32 = arith.constant 0 : i32
    %c0_i32_0 = arith.constant 0 : i32
    %c0_i32_1 = arith.constant 0 : i32
    return %c0_i32, %c0_i32_0 : i32, i32
  }
  func.func @transform_5(%arg0: i32) -> (i32, i32) {
    %c0_i32 = arith.constant 0 : i32
    %c0_i32_0 = arith.constant 0 : i32
    %c0_i32_1 = arith.constant 0 : i32
    return %c0_i32, %c0_i32_0 : i32, i32
  }
  func.func @transform_6(%arg0: i32) -> (i32, i32) {
    %c0_i32 = arith.constant 0 : i32
    %c0_i32_0 = arith.constant 0 : i32
    %c0_i32_1 = arith.constant 0 : i32
    return %c0_i32, %c0_i32_0 : i32, i32
  }
  func.func @transform_7(%arg0: i32) -> (i32, i32) {
    %c0_i32 = arith.constant 0 : i32
    %c0_i32_0 = arith.constant 0 : i32
    %c0_i32_1 = arith.constant 0 : i32
    return %c0_i32, %c0_i32_0 : i32, i32
  }
  func.func @transform_8(%arg0: i32) -> (i32, i32) {
    %c0_i32 = arith.constant 0 : i32
    %c0_i32_0 = arith.constant 0 : i32
    %c0_i32_1 = arith.constant 0 : i32
    return %c0_i32, %c0_i32_0 : i32, i32
  }
  func.func @transform_9(%arg0: i32) -> (i32, i32) {
    %c0_i32 = arith.constant 0 : i32
    %c0_i32_0 = arith.constant 0 : i32
    %c0_i32_1 = arith.constant 0 : i32
    return %c0_i32, %c0_i32_0 : i32, i32
  }
  func.func @transform_10(%arg0: i32) -> (i32, i32) {
    %c0_i32 = arith.constant 0 : i32
    %c0_i32_0 = arith.constant 0 : i32
    %c0_i32_1 = arith.constant 0 : i32
    return %c0_i32, %c0_i32_0 : i32, i32
  }
  func.func @transform_11(%arg0: i32) -> (i32, i32) {
    %c0_i32 = arith.constant 0 : i32
    %c0_i32_0 = arith.constant 0 : i32
    return %arg0, %c0_i32 : i32, i32
  }
}

</mosaic_0001>

<llo_original>
// kernel: tpu_custom_call.1
$region0: #{tpu_custom_call.1}
  #allocation0 [shape = 'u32[]', space=smem, size = 0x4, offset = 0x4, fixed_abs, tag = 'smem constant byte address 0x4 - core index']
  #allocation1 [shape = 'u32[144,128]{1,0:T(1,128)}', space=vmem, size = 0x12000, scoped, tag = 'internal scratch']
  %s0 = inlined_call_operand.vmem [shape: f32[8,8], index: 0, kind: input, shape index: {}]
  %s1 = inlined_call_operand.vmem [shape: f32[8,4], index: 1, kind: input, shape index: {}]
  %s2 = inlined_call_operand.hbm [shape: f32[8,64], index: 2, kind: input, shape index: {}]
  %s3 = inlined_call_operand.vmem [shape: f32[4,64], index: 3, kind: input, shape index: {}]
  %s4 = inlined_call_operand.vmem [shape: f32[1,64], index: 4, kind: input, shape index: {}]
  %s5 = inlined_call_operand.hbm [shape: f32[32,32], index: 5, kind: input, shape index: {}]
  %s6 = inlined_call_operand.vmem [shape: f32[1,32], index: 6, kind: input, shape index: {}]
  %s7 = inlined_call_operand.hbm [shape: f32[32,32], index: 7, kind: input, shape index: {}]
  %s8 = inlined_call_operand.vmem [shape: f32[1,32], index: 8, kind: input, shape index: {}]
  %s9 = inlined_call_operand.vmem [shape: f32[2,32], index: 9, kind: input, shape index: {}]
  %s10 = inlined_call_operand.vmem [shape: f32[1,2], index: 10, kind: input, shape index: {}]
  %s11 = inlined_call_operand.vmem [shape: f32[8,2], index: 11, kind: output, shape index: {}]
  %s12 = sld [smem:[#allocation0]]
  $region66: #{tpu_custom_call.1} parent=0
    _
  %s14 = ssub.s32 1, %s12
  %s15 = scalar_select 0, %s14, %s12
  $region1: #{tpu_custom_call.1} parent=0
    #allocation2 [shape = 'u8[4096]{0}', space=vmem, size = 0x1000, scoped, tag = 'input window, operand 2, single buffered']
    #allocation3 [shape = 's32[1]{0}', space=sflag, size = 0x4, scoped, tag = 'scoped memory for tpu_custom_call.1']
    #allocation4 [shape = 'u8[16384]{0}', space=vmem, size = 0x4000, scoped, tag = 'input window, operand 5, single buffered']
    #allocation5 [shape = 's32[1]{0}', space=sflag, size = 0x4, scoped, tag = 'scoped memory for tpu_custom_call.1']
    #allocation6 [shape = 'u8[16384]{0}', space=vmem, size = 0x4000, scoped, tag = 'input window, operand 7, single buffered']
    %16 = vsyncpa [#allocation3], 0
    %17 = vsyncpa [#allocation5], 0
    // Predicated region
    $region2: #{tpu_custom_call.1} parent=1 // pred_check
      _
    $region3: #{tpu_custom_call.1} parent=1 // pred_check_branch
      %19 = sbr.rel (0) target = $region5
    $region4: #{tpu_custom_call.1} parent=1 // pred_region
      _
    $region5: #{tpu_custom_call.1} parent=1 // pred_fallthru
      _
    // Predicated region
    $region6: #{tpu_custom_call.1} parent=1 // pred_check
      _
    $region7: #{tpu_custom_call.1} parent=1 // pred_check_branch
      %21 = sbr.rel (0) target = $region9
    $region8: #{tpu_custom_call.1} parent=1 // pred_region
      _
    $region9: #{tpu_custom_call.1} parent=1 // pred_fallthru
      _
    // Predicated region
    $region10: #{tpu_custom_call.1} parent=1 // pred_check
      _
    $region11: #{tpu_custom_call.1} parent=1 // pred_check_branch
      %23 = sbr.rel (0) target = $region13
    $region12: #{tpu_custom_call.1} parent=1 // pred_region
      %s25 = ssub.s32 128, 128
      %26 = vsyncadd [#allocation3], %s25
      %s28 = sshll.u32 [#allocation2], 4
      %s29 = int_to_ptr.vmem [resolvable:$true] %s28
      %31 = dma.hbm_to_vmem [thread:$0]  %s2, 128, %s29, [#allocation3]
    $region13: #{tpu_custom_call.1} parent=1 // pred_fallthru
      _
    // Predicated region
    $region14: #{tpu_custom_call.1} parent=1 // pred_check
      _
    $region15: #{tpu_custom_call.1} parent=1 // pred_check_branch
      %33 = sbr.rel (0) target = $region17
    $region16: #{tpu_custom_call.1} parent=1 // pred_region
      _
    $region17: #{tpu_custom_call.1} parent=1 // pred_fallthru
      _
    // Predicated region
    $region18: #{tpu_custom_call.1} parent=1 // pred_check
      _
    $region19: #{tpu_custom_call.1} parent=1 // pred_check_branch
      %35 = sbr.rel (0) target = $region21
    $region20: #{tpu_custom_call.1} parent=1 // pred_region
      _
    $region21: #{tpu_custom_call.1} parent=1 // pred_fallthru
      _
    // Predicated region
    $region22: #{tpu_custom_call.1} parent=1 // pred_check
      _
    $region23: #{tpu_custom_call.1} parent=1 // pred_check_branch
      %37 = sbr.rel (0) target = $region25
    $region24: #{tpu_custom_call.1} parent=1 // pred_region
      %s39 = ssub.s32 512, 512
      %40 = vsyncadd [#allocation5], %s39
      %s41 = sshll.u32 [#allocation4], 4
      %s42 = int_to_ptr.vmem [resolvable:$true] %s41
      %47 = dma.hbm_to_vmem [thread:$0]  %s5, 512, %s42, [#allocation5], 128, 128, 8
    $region25: #{tpu_custom_call.1} parent=1 // pred_fallthru
      _
    // Predicated region
    $region26: #{tpu_custom_call.1} parent=1 // pred_check
      _
    $region27: #{tpu_custom_call.1} parent=1 // pred_check_branch
      %49 = sbr.rel (0) target = $region29
    $region28: #{tpu_custom_call.1} parent=1 // pred_region
      _
    $region29: #{tpu_custom_call.1} parent=1 // pred_fallthru
      _
    // Predicated region
    $region30: #{tpu_custom_call.1} parent=1 // pred_check
      _
    $region31: #{tpu_custom_call.1} parent=1 // pred_check_branch
      %51 = sbr.rel (0) target = $region33
    $region32: #{tpu_custom_call.1} parent=1 // pred_region
      %s53 = ssub.s32 512, 512
      %54 = vsyncadd [#allocation5], %s53
      %s55 = sshll.u32 [#allocation6], 4
      %s56 = int_to_ptr.vmem [resolvable:$true] %s55
      %61 = dma.hbm_to_vmem [thread:$0]  %s7, 512, %s56, [#allocation5], 128, 128, 8
    $region33: #{tpu_custom_call.1} parent=1 // pred_fallthru
      _
    // Predicated region
    $region34: #{tpu_custom_call.1} parent=1 // pred_check
      _
    $region35: #{tpu_custom_call.1} parent=1 // pred_check_branch
      %63 = sbr.rel (0) target = $region37
    $region36: #{tpu_custom_call.1} parent=1 // pred_region
      _
    $region37: #{tpu_custom_call.1} parent=1 // pred_fallthru
      _
    // Predicated region
    $region38: #{tpu_custom_call.1} parent=1 // pred_check
      _
    $region39: #{tpu_custom_call.1} parent=1 // pred_check_branch
      %65 = sbr.rel (0) target = $region41
    $region40: #{tpu_custom_call.1} parent=1 // pred_region
      _
    $region41: #{tpu_custom_call.1} parent=1 // pred_fallthru
      _
    // Predicated region
    $region42: #{tpu_custom_call.1} parent=1 // pred_check
      _
    $region43: #{tpu_custom_call.1} parent=1 // pred_check_branch
      %67 = sbr.rel (0) target = $region45
    $region44: #{tpu_custom_call.1} parent=1 // pred_region
      _
    $region45: #{tpu_custom_call.1} parent=1 // pred_fallthru
      _
    // Predicated region
    $region46: #{tpu_custom_call.1} parent=1 // pred_check
      _
    $region47: #{tpu_custom_call.1} parent=1 // pred_check_branch
      %69 = sbr.rel (0) target = $region49
    $region48: #{tpu_custom_call.1} parent=1 // pred_region
      %70 = dma.done [#allocation3], 128
    $region49: #{tpu_custom_call.1} parent=1 // pred_fallthru
      _
    // Predicated region
    $region50: #{tpu_custom_call.1} parent=1 // pred_check
      _
    $region51: #{tpu_custom_call.1} parent=1 // pred_check_branch
      %72 = sbr.rel (0) target = $region53
    $region52: #{tpu_custom_call.1} parent=1 // pred_region
      %73 = dma.done [#allocation5], 512
    $region53: #{tpu_custom_call.1} parent=1 // pred_fallthru
      _
    // Predicated region
    $region54: #{tpu_custom_call.1} parent=1 // pred_check
      _
    $region55: #{tpu_custom_call.1} parent=1 // pred_check_branch
      %75 = sbr.rel (0) target = $region57
    $region56: #{tpu_custom_call.1} parent=1 // pred_region
      %76 = dma.done [#allocation5], 512
    $region57: #{tpu_custom_call.1} parent=1 // pred_fallthru
      _
    %v77 = vld [vmem:[%s0] sm:$0xff]
    %v78 = vld [vmem:[%s1] sm:$0xff]
    %v79 = vld [vmem:[#allocation2] sm:$0xff]
    %v80 = vld [vmem:[%s3] sm:$0xf]
    %vm81 = vcmask 31744
    %v83 = vsel %vm81, %v78, 0
    %vm85 = vcmask 1043456
    %v87 = vsel %vm85, %v80, 0
    %89 = vmatprep.subr.mxu0 0.0
    %90 = vmatpush1.msra.mxu0 0.0
    %91 = vmatprep.subr.mxu0 0.0
    %92 = vmatpush1.msra.mxu0 0.0
    %93 = vmatprep.subr.mxu0 0.0
    %94 = vmatpush1.msra.mxu0 0.0
    %95 = vmatprep.subr.mxu0 0.0
    %96 = vmatpush1.msra.mxu0 0.0
    %97 = vmatprep.subr.mxu0 0.0
    %98 = vmatpush1.msra.mxu0 0.0
    %99 = vmatprep.subr.mxu0 0.0
    %100 = vmatpush1.msra.mxu0 0.0
    %101 = vmatprep.subr.mxu0 0.0
    %102 = vmatpush1.msra.mxu0 0.0
    %103 = vmatprep.subr.mxu0 0.0
    %104 = vmatpush1.msra.mxu0 0.0
    %105 = vmatprep.subr.mxu0 0.0
    %106 = vmatpush1.msra.mxu0 0.0
    %107 = vmatprep.subr.mxu0 0.0
    %108 = vmatpush1.msra.mxu0 0.0
    %109 = vmatprep.subr.mxu0 0.0
    %110 = vmatpush1.msra.mxu0 0.0
    %111 = vmatprep.subr.mxu0 0.0
    %112 = vmatpush1.msra.mxu0 0.0
    %113 = vmatprep.subr.mxu0 0.0
    %114 = vmatpush1.msra.mxu0 0.0
    %115 = vmatprep.subr.mxu0 0.0
    %116 = vmatpush1.msra.mxu0 0.0
    %117 = vmatprep.subr.mxu0 0.0
    %118 = vmatpush1.msra.mxu0 0.0
    %119 = vmatprep.subr.mxu0 0.0
    %120 = vmatpush1.msra.mxu0 %v87
    %121 = vmatprep.subr.mxu0 0.0
    %122 = vmatpush2.msra.mxu0 0.0
    %123 = vmatprep.subr.mxu0 0.0
    %124 = vmatpush2.msra.mxu0 0.0
    %125 = vmatprep.subr.mxu0 0.0
    %126 = vmatpush2.msra.mxu0 0.0
    %127 = vmatprep.subr.mxu0 0.0
    %128 = vmatpush2.msra.mxu0 0.0
    %129 = vmatprep.subr.mxu0 0.0
    %130 = vmatpush2.msra.mxu0 0.0
    %131 = vmatprep.subr.mxu0 0.0
    %132 = vmatpush2.msra.mxu0 0.0
    %133 = vmatprep.subr.mxu0 0.0
    %134 = vmatpush2.msra.mxu0 0.0
    %135 = vmatprep.subr.mxu0 0.0
    %136 = vmatpush2.msra.mxu0 0.0
    %137 = vmatprep.subr.mxu0 0.0
    %138 = vmatpush2.msra.mxu0 0.0
    %139 = vmatprep.subr.mxu0 0.0
    %140 = vmatpush2.msra.mxu0 0.0
    %141 = vmatprep.subr.mxu0 0.0
    %142 = vmatpush2.msra.mxu0 0.0
    %143 = vmatprep.subr.mxu0 0.0
    %144 = vmatpush2.msra.mxu0 0.0
    %145 = vmatprep.subr.mxu0 0.0
    %146 = vmatpush2.msra.mxu0 0.0
    %147 = vmatprep.subr.mxu0 0.0
    %148 = vmatpush2.msra.mxu0 0.0
    %149 = vmatprep.subr.mxu0 0.0
    %150 = vmatpush2.msra.mxu0 0.0
    %151 = vmatprep.subr.mxu0 0.0
    %152 = vmatpush2.msra.mxu0 0.0
    %153 = vmatprep.mubr.f32.mxu0 0.0
    %154 = vmatmul.mubr.f32.gmra.mxu0 %v83
    %v155 = vpop.f32.mrf.mxu0
    %v156 = vadd.f32 0.0, %v155
    %v157 = vpop.f32.mrf.mxu0
    %158 = vdwg.mxu0
    %vm159 = vcmask 64512
    %v161 = vsel %vm159, %v77, 0
    %163 = vmatprep.subr.mxu0 0.0
    %164 = vmatpush1.msra.mxu0 0.0
    %165 = vmatprep.subr.mxu0 0.0
    %166 = vmatpush1.msra.mxu0 0.0
    %167 = vmatprep.subr.mxu0 0.0
    %168 = vmatpush1.msra.mxu0 0.0
    %169 = vmatprep.subr.mxu0 0.0
    %170 = vmatpush1.msra.mxu0 0.0
    %171 = vmatprep.subr.mxu0 0.0
    %172 = vmatpush1.msra.mxu0 0.0
    %173 = vmatprep.subr.mxu0 0.0
    %174 = vmatpush1.msra.mxu0 0.0
    %175 = vmatprep.subr.mxu0 0.0
    %176 = vmatpush1.msra.mxu0 0.0
    %177 = vmatprep.subr.mxu0 0.0
    %178 = vmatpush1.msra.mxu0 0.0
    %179 = vmatprep.subr.mxu0 0.0
    %180 = vmatpush1.msra.mxu0 0.0
    %181 = vmatprep.subr.mxu0 0.0
    %182 = vmatpush1.msra.mxu0 0.0
    %183 = vmatprep.subr.mxu0 0.0
    %184 = vmatpush1.msra.mxu0 0.0
    %185 = vmatprep.subr.mxu0 0.0
    %186 = vmatpush1.msra.mxu0 0.0
    %187 = vmatprep.subr.mxu0 0.0
    %188 = vmatpush1.msra.mxu0 0.0
    %189 = vmatprep.subr.mxu0 0.0
    %190 = vmatpush1.msra.mxu0 0.0
    %191 = vmatprep.subr.mxu0 0.0
    %192 = vmatpush1.msra.mxu0 0.0
    %193 = vmatprep.subr.mxu0 0.0
    %194 = vmatpush1.msra.mxu0 %v79
    %195 = vmatprep.subr.mxu0 0.0
    %196 = vmatpush2.msra.mxu0 0.0
    %197 = vmatprep.subr.mxu0 0.0
    %198 = vmatpush2.msra.mxu0 0.0
    %199 = vmatprep.subr.mxu0 0.0
    %200 = vmatpush2.msra.mxu0 0.0
    %201 = vmatprep.subr.mxu0 0.0
    %202 = vmatpush2.msra.mxu0 0.0
    %203 = vmatprep.subr.mxu0 0.0
    %204 = vmatpush2.msra.mxu0 0.0
    %205 = vmatprep.subr.mxu0 0.0
    %206 = vmatpush2.msra.mxu0 0.0
    %207 = vmatprep.subr.mxu0 0.0
    %208 = vmatpush2.msra.mxu0 0.0
    %209 = vmatprep.subr.mxu0 0.0
    %210 = vmatpush2.msra.mxu0 0.0
    %211 = vmatprep.subr.mxu0 0.0
    %212 = vmatpush2.msra.mxu0 0.0
    %213 = vmatprep.subr.mxu0 0.0
    %214 = vmatpush2.msra.mxu0 0.0
    %215 = vmatprep.subr.mxu0 0.0
    %216 = vmatpush2.msra.mxu0 0.0
    %217 = vmatprep.subr.mxu0 0.0
    %218 = vmatpush2.msra.mxu0 0.0
    %219 = vmatprep.subr.mxu0 0.0
    %220 = vmatpush2.msra.mxu0 0.0
    %221 = vmatprep.subr.mxu0 0.0
    %222 = vmatpush2.msra.mxu0 0.0
    %223 = vmatprep.subr.mxu0 0.0
    %224 = vmatpush2.msra.mxu0 0.0
    %225 = vmatprep.subr.mxu0 0.0
    %226 = vmatpush2.msra.mxu0 0.0
    %227 = vmatprep.mubr.f32.mxu0 0.0
    %228 = vmatmul.mubr.f32.gmra.mxu0 %v161
    %v229 = vpop.f32.mrf.mxu0
    %v230 = vadd.f32 %v156, %v229
    %v231 = vpop.f32.mrf.mxu0
    %232 = vdwg.mxu0
    %v233 = vld [vmem:[%s4] sm:$0x1]
    %v235 = vlaneseq
    %v236 = vshrl.u32 %v235, 7
    %v237 = vsub.s32 0, %v236
    %v238 = vrot.slane %v233, %v237
    %v240 = vadd.f32 %v230, %v238
    %v241 = vmax.f32 %v240, 0.0
    %v242 = vld [vmem:[#allocation4] sm:$0xff]
    %v243 = vld [vmem:[#allocation4 + $0x8] sm:$0xff]
    %v244 = vld [vmem:[#allocation4 + $0x10] sm:$0xff]
    %v245 = vld [vmem:[#allocation4 + $0x18] sm:$0xff]
    %v246 = vld [vmem:[%s6] sm:$0x1]
    %v248 = vlaneseq
    %v249 = vshrl.u32 %v248, 7
    %v250 = vsub.s32 0, %v249
    %v251 = vrot.slane %v246, %v250
    %vm253 = vcmask 261120
    %v255 = vsel %vm253, %v241, 0
    %257 = vmatprep.subr.mxu0 0.0
    %258 = vmatpush1.msra.mxu0 0.0
    %259 = vmatprep.subr.mxu0 0.0
    %260 = vmatpush1.msra.mxu0 0.0
    %261 = vmatprep.subr.mxu0 0.0
    %262 = vmatpush1.msra.mxu0 0.0
    %263 = vmatprep.subr.mxu0 0.0
    %264 = vmatpush1.msra.mxu0 0.0
    %265 = vmatprep.subr.mxu0 0.0
    %266 = vmatpush1.msra.mxu0 0.0
    %267 = vmatprep.subr.mxu0 0.0
    %268 = vmatpush1.msra.mxu0 0.0
    %269 = vmatprep.subr.mxu0 0.0
    %270 = vmatpush1.msra.mxu0 0.0
    %271 = vmatprep.subr.mxu0 0.0
    %272 = vmatpush1.msra.mxu0 0.0
    %273 = vmatprep.subr.mxu0 0.0
    %274 = vmatpush1.msra.mxu0 0.0
    %275 = vmatprep.subr.mxu0 0.0
    %276 = vmatpush1.msra.mxu0 0.0
    %277 = vmatprep.subr.mxu0 0.0
    %278 = vmatpush1.msra.mxu0 0.0
    %279 = vmatprep.subr.mxu0 0.0
    %280 = vmatpush1.msra.mxu0 0.0
    %281 = vmatprep.subr.mxu0 0.0
    %282 = vmatpush1.msra.mxu0 %v245
    %283 = vmatprep.subr.mxu0 0.0
    %284 = vmatpush1.msra.mxu0 %v244
    %285 = vmatprep.subr.mxu0 0.0
    %286 = vmatpush1.msra.mxu0 %v243
    %287 = vmatprep.subr.mxu0 0.0
    %288 = vmatpush1.msra.mxu0 %v242
    %289 = vmatprep.subr.mxu0 0.0
    %290 = vmatpush2.msra.mxu0 0.0
    %291 = vmatprep.subr.mxu0 0.0
    %292 = vmatpush2.msra.mxu0 0.0
    %293 = vmatprep.subr.mxu0 0.0
    %294 = vmatpush2.msra.mxu0 0.0
    %295 = vmatprep.subr.mxu0 0.0
    %296 = vmatpush2.msra.mxu0 0.0
    %297 = vmatprep.subr.mxu0 0.0
    %298 = vmatpush2.msra.mxu0 0.0
    %299 = vmatprep.subr.mxu0 0.0
    %300 = vmatpush2.msra.mxu0 0.0
    %301 = vmatprep.subr.mxu0 0.0
    %302 = vmatpush2.msra.mxu0 0.0
    %303 = vmatprep.subr.mxu0 0.0
    %304 = vmatpush2.msra.mxu0 0.0
    %305 = vmatprep.subr.mxu0 0.0
    %306 = vmatpush2.msra.mxu0 0.0
    %307 = vmatprep.subr.mxu0 0.0
    %308 = vmatpush2.msra.mxu0 0.0
    %309 = vmatprep.subr.mxu0 0.0
    %310 = vmatpush2.msra.mxu0 0.0
    %311 = vmatprep.subr.mxu0 0.0
    %312 = vmatpush2.msra.mxu0 0.0
    %313 = vmatprep.subr.mxu0 0.0
    %314 = vmatpush2.msra.mxu0 0.0
    %315 = vmatprep.subr.mxu0 0.0
    %316 = vmatpush2.msra.mxu0 0.0
    %317 = vmatprep.subr.mxu0 0.0
    %318 = vmatpush2.msra.mxu0 0.0
    %319 = vmatprep.subr.mxu0 0.0
    %320 = vmatpush2.msra.mxu0 0.0
    %321 = vmatprep.mubr.f32.mxu0 0.0
    %322 = vmatmul.mubr.f32.gmra.mxu0 %v255
    %v323 = vpop.f32.mrf.mxu0
    %v324 = vadd.f32 %v251, %v323
    %v325 = vpop.f32.mrf.mxu0
    %326 = vdwg.mxu0
    %v327 = vmax.f32 %v324, 0.0
    %v328 = vld [vmem:[#allocation6] sm:$0xff]
    %v329 = vld [vmem:[#allocation6 + $0x8] sm:$0xff]
    %v330 = vld [vmem:[#allocation6 + $0x10] sm:$0xff]
    %v331 = vld [vmem:[#allocation6 + $0x18] sm:$0xff]
    %v332 = vld [vmem:[%s8] sm:$0x1]
    %v334 = vlaneseq
    %v335 = vshrl.u32 %v334, 7
    %v336 = vsub.s32 0, %v335
    %v337 = vrot.slane %v332, %v336
    %339 = vrot.lane.b32.xlu0 %v241, 96
    %v340 = vpop.permute.xlu0 %339
    %v341 = vsel %vm253, %v340, 0
    %343 = vmatprep.subr.mxu0 0.0
    %344 = vmatpush1.msra.mxu0 0.0
    %345 = vmatprep.subr.mxu0 0.0
    %346 = vmatpush1.msra.mxu0 0.0
    %347 = vmatprep.subr.mxu0 0.0
    %348 = vmatpush1.msra.mxu0 0.0
    %349 = vmatprep.subr.mxu0 0.0
    %350 = vmatpush1.msra.mxu0 0.0
    %351 = vmatprep.subr.mxu0 0.0
    %352 = vmatpush1.msra.mxu0 0.0
    %353 = vmatprep.subr.mxu0 0.0
    %354 = vmatpush1.msra.mxu0 0.0
    %355 = vmatprep.subr.mxu0 0.0
    %356 = vmatpush1.msra.mxu0 0.0
    %357 = vmatprep.subr.mxu0 0.0
    %358 = vmatpush1.msra.mxu0 0.0
    %359 = vmatprep.subr.mxu0 0.0
    %360 = vmatpush1.msra.mxu0 0.0
    %361 = vmatprep.subr.mxu0 0.0
    %362 = vmatpush1.msra.mxu0 0.0
    %363 = vmatprep.subr.mxu0 0.0
    %364 = vmatpush1.msra.mxu0 0.0
    %365 = vmatprep.subr.mxu0 0.0
    %366 = vmatpush1.msra.mxu0 0.0
    %367 = vmatprep.subr.mxu0 0.0
    %368 = vmatpush1.msra.mxu0 %v331
    %369 = vmatprep.subr.mxu0 0.0
    %370 = vmatpush1.msra.mxu0 %v330
    %371 = vmatprep.subr.mxu0 0.0
    %372 = vmatpush1.msra.mxu0 %v329
    %373 = vmatprep.subr.mxu0 0.0
    %374 = vmatpush1.msra.mxu0 %v328
    %375 = vmatprep.subr.mxu0 0.0
    %376 = vmatpush2.msra.mxu0 0.0
    %377 = vmatprep.subr.mxu0 0.0
    %378 = vmatpush2.msra.mxu0 0.0
    %379 = vmatprep.subr.mxu0 0.0
    %380 = vmatpush2.msra.mxu0 0.0
    %381 = vmatprep.subr.mxu0 0.0
    %382 = vmatpush2.msra.mxu0 0.0
    %383 = vmatprep.subr.mxu0 0.0
    %384 = vmatpush2.msra.mxu0 0.0
    %385 = vmatprep.subr.mxu0 0.0
    %386 = vmatpush2.msra.mxu0 0.0
    %387 = vmatprep.subr.mxu0 0.0
    %388 = vmatpush2.msra.mxu0 0.0
    %389 = vmatprep.subr.mxu0 0.0
    %390 = vmatpush2.msra.mxu0 0.0
    %391 = vmatprep.subr.mxu0 0.0
    %392 = vmatpush2.msra.mxu0 0.0
    %393 = vmatprep.subr.mxu0 0.0
    %394 = vmatpush2.msra.mxu0 0.0
    %395 = vmatprep.subr.mxu0 0.0
    %396 = vmatpush2.msra.mxu0 0.0
    %397 = vmatprep.subr.mxu0 0.0
    %398 = vmatpush2.msra.mxu0 0.0
    %399 = vmatprep.subr.mxu0 0.0
    %400 = vmatpush2.msra.mxu0 0.0
    %401 = vmatprep.subr.mxu0 0.0
    %402 = vmatpush2.msra.mxu0 0.0
    %403 = vmatprep.subr.mxu0 0.0
    %404 = vmatpush2.msra.mxu0 0.0
    %405 = vmatprep.subr.mxu0 0.0
    %406 = vmatpush2.msra.mxu0 0.0
    %407 = vmatprep.mubr.f32.mxu0 0.0
    %408 = vmatmul.mubr.f32.gmra.mxu0 %v341
    %v409 = vpop.f32.mrf.mxu0
    %v410 = vadd.f32 %v337, %v409
    %v411 = vpop.f32.mrf.mxu0
    %412 = vdwg.mxu0
    %v413 = vmax.f32 %v410, 0.0
    %v414 = vld [vmem:[%s9] sm:$0x1]
    %v415 = vlaneseq
    %v416 = vshrl.u32 %v415, 7
    %v417 = vsub.s32 0, %v416
    %v418 = vrot.slane %v414, %v417
    %v419 = vmul.f32 %v327, %v418
    %v420 = vsel %vm253, %v419, 0.0
    %421 = vadd.xlane.f32.xlu0 %v420
    %v422 = vpop.xlane.xlu0 %421
    %v423 = vld [vmem:[%s9 + $0x1] sm:$0x1]
    %v424 = vlaneseq
    %v425 = vshrl.u32 %v424, 7
    %v426 = vsub.s32 0, %v425
    %v427 = vrot.slane %v423, %v426
    %v428 = vmul.f32 %v413, %v427
    %v429 = vsel %vm253, %v428, 0.0
    %430 = vadd.xlane.f32.xlu0 %v429
    %v431 = vpop.xlane.xlu0 %430
    %v432 = vlaneseq
    %v433 = vand.u32 %v432, 127
    %vm434 = vcmp.eq.s32.totalorder %v433, 0
    %v435 = vsel %vm434, %v422, %v431
    %v436 = vld [vmem:[%s10] sm:$0x1]
    %v438 = vlaneseq
    %v439 = vshrl.u32 %v438, 7
    %v440 = vsub.s32 0, %v439
    %v441 = vrot.slane %v436, %v440
    %v443 = vadd.f32 %v435, %v441
    %vm444 = vcmask 15360
    %445 = vst.msk [vmem:[%s11] sm:$0xff] %vm444, %v443
    // Predicated region
    $region58: #{tpu_custom_call.1} parent=1 // pred_check
      _
    $region59: #{tpu_custom_call.1} parent=1 // pred_check_branch
      %447 = sbr.rel (0) target = $region61
    $region60: #{tpu_custom_call.1} parent=1 // pred_region
      _
    $region61: #{tpu_custom_call.1} parent=1 // pred_fallthru
      _
    // Predicated region
    $region62: #{tpu_custom_call.1} parent=1 // pred_check
      _
    $region63: #{tpu_custom_call.1} parent=1 // pred_check_branch
      %449 = sbr.rel (0) target = $region65
    $region64: #{tpu_custom_call.1} parent=1 // pred_region
      _
    $region65: #{tpu_custom_call.1} parent=1 // pred_fallthru
      _
    %450 = vsyncpa [#allocation3], 1
    %451 = vsyncpa [#allocation5], 1

</llo_original>
